<compile_context>
chip_gen: v6e
topology: v6e:2x2x1
jax: 0.10.0
libtpu: 0.0.40
codegen_flags: <defaults>
</compile_context>

<pallas_src>
import functools
import numpy as np
import jax
import jax.numpy as jnp
from jax.experimental import pallas as pl
from jax.experimental.pallas import tpu as pltpu


def _ru(x, m):
    return (x + m - 1) // m * m


def _pair(v):
    return (v, v) if isinstance(v, int) else tuple(v)


# ----------------------------- VMEM budget (generation-aware) -----------------------------

def _vmem_capacity():
    try:
        return int(pltpu.get_tpu_info().vmem_capacity_bytes)
    except Exception:
        return 64 * 1024 * 1024          # conservative fallback (v7x-sized)


_VMEM_CAP = _vmem_capacity()
_VMEM_BUDGET = min(_VMEM_CAP // 2, 48 * 1024 * 1024)       # footprint budget for tiling
_VMEM_LIMIT = min(_VMEM_CAP * 3 // 4, 96 * 1024 * 1024)    # compiler scoped-VMEM limit


# ----------------------------- tile selection -----------------------------

def _pick_tile(n, cap):
    # 128-multiple tile <= cap for an axis of length n; returns (tile, padded).
    n128 = _ru(n, 128)
    best_key, best = None, (128, n128)
    for t in range(128, max(cap, 128) + 1, 128):
        p = _ru(n128, t)
        key = (p + 256 * (p // t), p, -t)
        if best_key is None or key < best_key:
            best_key, best = key, (t, p)
    return best


def _pick_tn(cout):
    Np = _ru(cout, 128)                   # lane-dense: always a 128-multiple
    if Np <= 512:
        return Np, Np
    return _pick_tile(cout, 512)


def _pick_tk(K, tn):
    # Single full-K block if the double-buffered bf16 weight block fits comfortably.
    w_allow = max(4 * 1024 * 1024, _VMEM_BUDGET // 3)
    if 4 * K * tn <= w_allow:             # 2 buffers * K * tn * 2 bytes
        return K, K
    cap = max(128, min(4096, (w_allow // (4 * tn)) // 128 * 128))
    return _pick_tile(K, cap)


def _pick_tm(M, tk, tn, has_skip):
    if M <= 512:
        return _ru(M, 16)                 # never shrink small-M tiles (single row tile)

    best_key, tm = None, 512
    for t in (256, 320, 384, 448, 512):
        p = _ru(M, t)
        key = (p + 64 * (p // t), p)
        if best_key is None or key < best_key:
            best_key, tm = key, t

    def footprint(t):                     # double-buffered VMEM estimate (bf16 in/out)
        a = 2 * (t * tk * 2)
        w = 2 * (tk * tn * 2)
        o = 2 * (t * tn * 2)
        s = 2 * (t * tn * 2) if has_skip else 0
        acc = t * tn * 4
        sb = 2 * (2 * tn * 4)
        return a + w + o + s + acc + sb

    while tm > 64 and footprint(tm) > _VMEM_BUDGET:
        tm = max(64, _ru(tm // 2, 16))
    return tm


def _pick_rows(M, bytes_per_row):
    tm = min(_ru(M, 16), 512)
    while tm > 16 and tm * bytes_per_row > 4 * 1024 * 1024:
        tm = max(16, _ru(tm // 2, 16))
    return tm


# ----------------------------- Pallas kernels -----------------------------

def _mm_kernel(*refs, relu, nk, has_skip, res_scale):
    # C = A @ W (bf16 in, f32 scratch acc); epilogue: *scale + shift
    # [, *res_scale + skip] [, ReLU]; store bf16.
    if has_skip:
        a_ref, w_ref, sb_ref, skip_ref, o_ref, acc_ref = refs
    else:
        a_ref, w_ref, sb_ref, o_ref, acc_ref = refs
        skip_ref = None

    def epilogue(acc):
        sb = sb_ref[...]
        y = acc * sb[0:1, :] + sb[1:2, :]
        if has_skip:
            y = y * res_scale + skip_ref[...].astype(jnp.float32)
        if relu:
            y = jnp.maximum(y, 0.0)
        return y.astype(o_ref.dtype)

    if nk == 1:
        acc = jnp.dot(a_ref[...], w_ref[...], preferred_element_type=jnp.float32)
        o_ref[...] = epilogue(acc)
    else:
        k = pl.program_id(2)

        @pl.when(k == 0)
        def _():
            acc_ref[...] = jnp.zeros_like(acc_ref)

        acc_ref[...] += jnp.dot(a_ref[...], w_ref[...],
                                preferred_element_type=jnp.float32)

        @pl.when(k == pl.num_programs(2) - 1)
        def _():
            o_ref[...] = epilogue(acc_ref[...])


def _maxpool_kernel(x_ref, o_ref):
    # x: (taps, TM, C) stacked window taps -> max over taps
    o_ref[...] = jnp.max(x_ref[...], axis=0)


def _avgpool_kernel(x_ref, inv_ref, o_ref):
    # count_include_pad=False average: sum over taps * (1 / valid_count)
    s = jnp.sum(x_ref[...].astype(jnp.float32), axis=0)
    o_ref[...] = (s * inv_ref[...]).astype(o_ref.dtype)


def _head_kernel(x_ref, o_ref, *, B, S):
    # Per pixel: 2*B slabs of (23+2*S) channels; locals 0..2 -> sigmoid,
    # [3,3+S), [3+S,3+2S), [3+2S,3+2S+20) -> channel softmax (mask-based).
    x = x_ref[...]
    M, C = x.shape
    c = jax.lax.broadcasted_iota(jnp.int32, (M, C), 1)
    group = 23 + 2 * S
    local = c % group
    sig = 1.0 / (1.0 + jnp.exp(-x))
    out = jnp.where(local < 3, sig, 0.0)
    bounds = [(3, 3 + S), (3 + S, 3 + 2 * S), (3 + 2 * S, 3 + 2 * S + 20)]
    for j in range(2 * B):
        base = group * j
        for lo, hi in bounds:
            m = (c >= base + lo) & (c < base + hi)
            xm = jnp.where(m, x, -jnp.inf)
            mx = jnp.max(xm, axis=-1, keepdims=True)
            e = jnp.where(m, jnp.exp(x - mx), 0.0)
            s = jnp.sum(e, axis=-1, keepdims=True)
            out = out + jnp.where(m, e / s, 0.0)
    o_ref[...] = out


# ----------------------------- Pallas wrappers -----------------------------

def _window_slices(xpad, kh, kw, sh, sw, dh, dw, Ho, Wo):
    cols = []
    for i in range(kh):
        for j in range(kw):
            cols.append(xpad[:, i * dh: i * dh + (Ho - 1) * sh + 1: sh,
                                j * dw: j * dw + (Wo - 1) * sw + 1: sw, :])
    return cols


@functools.partial(jax.jit, static_argnames=(
    "kh", "kw", "cout", "tk", "tn", "stride", "padding", "dilation", "relu", "res_scale"))
def conv2d_pallas(x, wmat, sb, skip=None, *, kh, kw, cout, tk, tn,
                  stride=1, padding=0, dilation=1, relu=True, res_scale=1.0):
    # x: NHWC (bf16 or f32); wmat: pre-laid-out bf16 (Kp, Np); sb: f32 (2, Np)
    sh, sw = _pair(stride)
    ph, pw = _pair(padding)
    dh, dw = _pair(dilation)
    N, H, W, Cin = x.shape
    Kp, Np = wmat.shape
    K = kh * kw * Cin

    xb = x if x.dtype == jnp.bfloat16 else x.astype(jnp.bfloat16)
    if kh == 1 and kw == 1 and sh == 1 and sw == 1 and ph == 0 and pw == 0:
        Ho, Wo = H, W
        patches = xb.reshape(N * H * W, Cin)
    else:
        xp = jnp.pad(xb, ((0, 0), (ph, ph), (pw, pw), (0, 0)))
        Hp, Wp = H + 2 * ph, W + 2 * pw
        Ho = (Hp - (kh - 1) * dh - 1) // sh + 1
        Wo = (Wp - (kw - 1) * dw - 1) // sw + 1
        cols = _window_slices(xp, kh, kw, sh, sw, dh, dw, Ho, Wo)
        patches = jnp.concatenate(cols, axis=-1).reshape(N * Ho * Wo, K)

    M = N * Ho * Wo
    has_skip = skip is not None
    TM = _pick_tm(M, tk, tn, has_skip)
    Mp = _ru(M, TM)
    if Mp > M or Kp > K:
        patches = jnp.pad(patches, ((0, Mp - M), (0, Kp - K)))

    nm, nn, nk = Mp // TM, Np // tn, Kp // tk

    in_specs = [pl.BlockSpec((TM, tk), lambda i, j, k: (i, k)),
                pl.BlockSpec((tk, tn), lambda i, j, k: (k, j)),
                pl.BlockSpec((2, tn), lambda i, j, k: (0, j))]
    args = [patches, wmat, sb]
    if has_skip:
        skip2 = skip.reshape(M, cout).astype(jnp.bfloat16)
        skip2 = jnp.pad(skip2, ((0, Mp - M), (0, Np - cout)))
        in_specs.append(pl.BlockSpec((TM, tn), lambda i, j, k: (i, j)))
        args.append(skip2)

    flops = 2 * Mp * Kp * Np
    bytes_accessed = (patches.size * 2) * nn + wmat.size * 2 + Mp * Np * 2
    if has_skip:
        bytes_accessed += Mp * Np * 2

    out = pl.pallas_call(
        functools.partial(_mm_kernel, relu=relu, nk=nk,
                          has_skip=has_skip, res_scale=res_scale),
        out_shape=jax.ShapeDtypeStruct((Mp, Np), jnp.bfloat16),
        grid_spec=pltpu.PrefetchScalarGridSpec(
            num_scalar_prefetch=0,
            grid=(nm, nn, nk),
            in_specs=in_specs,
            out_specs=pl.BlockSpec((TM, tn), lambda i, j, k: (i, j)),
            scratch_shapes=[pltpu.VMEM((TM, tn), jnp.float32)]),
        compiler_params=pltpu.CompilerParams(
            dimension_semantics=("parallel", "parallel", "arbitrary"),
            vmem_limit_bytes=_VMEM_LIMIT),
        cost_estimate=pl.CostEstimate(flops=flops, transcendentals=0,
                                      bytes_accessed=bytes_accessed),
    )(*args)
    out = out[:M, :cout]
    return out.reshape(N, Ho, Wo, cout)


def conv(x, p, *, stride=1, padding=0, dilation=1, relu=True, skip=None, res_scale=1.0):
    return conv2d_pallas(x, p["wmat"], p["sb"], skip,
                         kh=p["kh"], kw=p["kw"], cout=p["cout"],
                         tk=p["tk"], tn=p["tn"],
                         stride=stride, padding=padding, dilation=dilation,
                         relu=relu, res_scale=res_scale)


@functools.partial(jax.jit, static_argnames=("k", "s"))
def maxpool(x, k, s):
    N, H, W, C = x.shape
    Ho, Wo = (H - k) // s + 1, (W - k) // s + 1
    M = N * Ho * Wo
    cols = _window_slices(x, k, k, s, s, 1, 1, Ho, Wo)
    stacked = jnp.stack(cols, 0).reshape(k * k, M, C)
    TM = _pick_rows(M, (k * k + 1) * C * 4)
    Mp = _ru(M, TM)
    stacked = jnp.pad(stacked, ((0, 0), (0, Mp - M), (0, 0)))
    out = pl.pallas_call(
        _maxpool_kernel,
        out_shape=jax.ShapeDtypeStruct((Mp, C), x.dtype),
        grid=(Mp // TM,),
        in_specs=[pl.BlockSpec((k * k, TM, C), lambda i: (0, i, 0))],
        out_specs=pl.BlockSpec((TM, C), lambda i: (i, 0)),
        compiler_params=pltpu.CompilerParams(dimension_semantics=("parallel",)),
    )(stacked)
    return out[:M].reshape(N, Ho, Wo, C)


@jax.jit
def avgpool_3x3_s1_p1(x):
    # AvgPool2d(3, stride=1, padding=1, count_include_pad=False)
    N, H, W, C = x.shape
    xpad = jnp.pad(x, ((0, 0), (1, 1), (1, 1), (0, 0)))
    Ho, Wo = H, W
    M = N * Ho * Wo
    cols = _window_slices(xpad, 3, 3, 1, 1, 1, 1, Ho, Wo)
    stacked = jnp.stack(cols, 0).reshape(9, M, C)

    ones = np.pad(np.ones((1, H, W, 1), np.float32), ((0, 0), (1, 1), (1, 1), (0, 0)))
    cnt = np.zeros((1, Ho, Wo, 1), np.float32)
    for i in range(3):
        for j in range(3):
            cnt += ones[:, i:i + Ho, j:j + Wo, :]
    inv = np.array(np.broadcast_to(1.0 / cnt, (N, Ho, Wo, 1))).reshape(M, 1)

    TM = _pick_rows(M, 10 * C * 4)
    Mp = _ru(M, TM)
    stacked = jnp.pad(stacked, ((0, 0), (0, Mp - M), (0, 0)))
    inv = jnp.pad(jnp.asarray(inv), ((0, Mp - M), (0, 0)))
    out = pl.pallas_call(
        _avgpool_kernel,
        out_shape=jax.ShapeDtypeStruct((Mp, C), x.dtype),
        grid=(Mp // TM,),
        in_specs=[pl.BlockSpec((9, TM, C), lambda i: (0, i, 0)),
                  pl.BlockSpec((TM, 1), lambda i: (i, 0))],
        out_specs=pl.BlockSpec((TM, C), lambda i: (i, 0)),
        compiler_params=pltpu.CompilerParams(dimension_semantics=("parallel",)),
    )(stacked, inv)
    return out[:M].reshape(N, Ho, Wo, C)


@functools.partial(jax.jit, static_argnames=("B", "S"))
def head_pallas(y, B, S):
    N, H, W, C = y.shape  # C == (23 + 2*S) * 2*B == 204
    Cp = _ru(C, 128)       # lane-dense width (204 -> 256); extra cols sliced off
    M = N * H * W
    TM = _pick_rows(M, 2 * Cp * 4)
    Mp = _ru(M, TM)
    x2 = jnp.pad(y.reshape(M, C).astype(jnp.float32), ((0, Mp - M), (0, Cp - C)))
    out = pl.pallas_call(
        functools.partial(_head_kernel, B=B, S=S),
        out_shape=jax.ShapeDtypeStruct((Mp, Cp), jnp.float32),
        grid=(Mp // TM,),
        in_specs=[pl.BlockSpec((TM, Cp), lambda i: (i, 0))],
        out_specs=pl.BlockSpec((TM, Cp), lambda i: (i, 0)),
        compiler_params=pltpu.CompilerParams(dimension_semantics=("parallel",)),
    )(x2)
    return out[:M, :C].reshape(N, H, W, C)


# ----------------------------- parameters -----------------------------

class ParamGen:
    def __init__(self, seed=0):
        self.key = jax.random.PRNGKey(seed)
        self.i = 0

    def normal(self, shape, std):
        self.i += 1
        k = jax.random.fold_in(self.key, self.i)
        return std * jax.random.normal(k, shape, jnp.float32)


def make_raw(pg, cin, cout, ksize, *, bias, bn, bn_eps):
    kh, kw = _pair(ksize)
    fan_in = cin * kh * kw
    w = pg.normal((cout, cin, kh, kw), (2.0 / fan_in) ** 0.5)
    b = jnp.zeros((cout,), jnp.float32)
    if bn:
        gamma = jnp.ones((cout,), jnp.float32)
        beta = jnp.zeros((cout,), jnp.float32)
        mean = jnp.zeros((cout,), jnp.float32)
        var = jnp.ones((cout,), jnp.float32)
        scale = gamma / jnp.sqrt(var + bn_eps)
        shift = beta - mean * scale
        if bias:
            shift = shift + b * scale
    else:
        scale = jnp.ones((cout,), jnp.float32)
        shift = b
    return {"w": w, "scale": scale, "shift": shift}


def fuse_raw(raws):
    # Parallel convs sharing the same input -> one conv with concatenated out channels.
    return {"w": jnp.concatenate([r["w"] for r in raws], axis=0),
            "scale": jnp.concatenate([r["scale"] for r in raws], axis=0),
            "shift": jnp.concatenate([r["shift"] for r in raws], axis=0)}


def layout_conv(raw):
    # Pre-transpose / pre-pad weights to (Kp, Np) bf16 matmul layout; pick tiles once.
    w = raw["w"]
    cout, cin, kh, kw = map(int, w.shape)
    K = kh * kw * cin
    tn, Np = _pick_tn(cout)
    tk, Kp = _pick_tk(K, tn)
    wmat = jnp.transpose(w, (2, 3, 1, 0)).reshape(K, cout)
    wmat = jnp.pad(wmat, ((0, Kp - K), (0, Np - cout))).astype(jnp.bfloat16)
    scale = jnp.pad(raw["scale"], (0, Np - cout))
    shift = jnp.pad(raw["shift"], (0, Np - cout))
    sb = jnp.stack([scale, shift], axis=0)          # (2, Np) f32
    return {"wmat": wmat, "sb": sb,
            "kh": kh, "kw": kw, "cout": cout, "tk": int(tk), "tn": int(tn)}


def init_model(pg):
    raw_bas = lambda ci, co, k: make_raw(pg, ci, co, k, bias=False, bn=True, bn_eps=1e-3)
    raw_cv = lambda ci, co, k: make_raw(pg, ci, co, k, bias=True, bn=False, bn_eps=0.0)
    raw_cvbn = lambda ci, co, k: make_raw(pg, ci, co, k, bias=True, bn=True, bn_eps=1e-5)
    bas = lambda ci, co, k: layout_conv(raw_bas(ci, co, k))
    cv = lambda ci, co, k: layout_conv(raw_cv(ci, co, k))
    cvbn = lambda ci, co, k: layout_conv(raw_cvbn(ci, co, k))
    fuse = lambda raws: layout_conv(fuse_raw(raws))

    P = {}
    P["conv2d_1a"] = bas(3, 32, 3)
    P["conv2d_2a"] = bas(32, 32, 3)
    P["conv2d_2b"] = bas(32, 64, 3)
    P["conv2d_3b"] = bas(64, 80, 1)
    P["conv2d_4a"] = bas(80, 192, 3)
    P["mixed_5b"] = {
        "in_fused": fuse([raw_bas(192, 96, 1), raw_bas(192, 48, 1), raw_bas(192, 64, 1)]),
        "b1_1": bas(48, 64, 5),
        "b2_1": bas(64, 96, 3), "b2_2": bas(96, 96, 3),
        "b3": bas(192, 64, 1),
    }
    P["repeat"] = [{
        "in_fused": fuse([raw_bas(320, 32, 1), raw_bas(320, 32, 1), raw_bas(320, 32, 1)]),
        "b1_1": bas(32, 32, 3),
        "b2_1": bas(32, 48, 3), "b2_2": bas(48, 64, 3),
        "conv2d": cv(128, 320, 1),
    } for _ in range(10)]
    P["mixed_6a"] = {
        "b0": bas(320, 384, 3),
        "b1_0": bas(320, 256, 1), "b1_1": bas(256, 256, 3), "b1_2": bas(256, 384, 3),
    }
    P["repeat_1"] = [{
        "in_fused": fuse([raw_bas(1088, 192, 1), raw_bas(1088, 128, 1)]),
        "b1_1": bas(128, 160, (1, 7)), "b1_2": bas(160, 192, (7, 1)),
        "conv2d": cv(384, 1088, 1),
    } for _ in range(20)]
    P["mixed_7a"] = {
        "in_fused": fuse([raw_bas(1088, 256, 1), raw_bas(1088, 256, 1), raw_bas(1088, 256, 1)]),
        "b0_1": bas(256, 384, 3), "b1_1": bas(256, 288, 3),
        "b2_1": bas(256, 288, 3), "b2_2": bas(288, 320, 3),
    }
    mk_b8 = lambda: {
        "in_fused": fuse([raw_bas(2080, 192, 1), raw_bas(2080, 192, 1)]),
        "b1_1": bas(192, 224, (1, 3)), "b1_2": bas(224, 256, (3, 1)),
        "conv2d": cv(448, 2080, 1),
    }
    P["repeat_2"] = [mk_b8() for _ in range(9)]
    P["block8"] = mk_b8()
    P["conv2d_7b_yy"] = bas(2080, 3328, 1)
    P["conv1"] = bas(3328, 1536, 1)
    P["conv2"] = bas(1536, 1536, 3)
    P["conv3"] = bas(1536, 1536, 3)
    # 4 head branches' first conv all take the same feature map -> fuse to 4*1536 channels
    P["c1_fused"] = fuse([raw_cvbn(1536, 1536, 3) for _ in range(4)])
    P["branches"] = [{
        "c2": cvbn(1536, 204, 3),
        "exp": [cvbn(204, 204, 3) for _ in range(6)] + [cv(204, 204, 3)],
    } for _ in range(4)]
    return P


# ----------------------------- forward -----------------------------

def mixed_5b_fwd(x, p):
    f = conv(x, p["in_fused"])                 # 96 | 48 | 64
    x0 = f[..., :96]
    x1 = conv(f[..., 96:144], p["b1_1"], padding=2)
    x2 = conv(conv(f[..., 144:208], p["b2_1"], padding=1), p["b2_2"], padding=1)
    x3 = conv(avgpool_3x3_s1_p1(x), p["b3"])
    return jnp.concatenate([x0, x1, x2, x3], axis=-1)


def block35_fwd(x, p, scale):
    f = conv(x, p["in_fused"])                 # 32 | 32 | 32
    x0 = f[..., :32]
    x1 = conv(f[..., 32:64], p["b1_1"], padding=1)
    x2 = conv(conv(f[..., 64:96], p["b2_1"], padding=1), p["b2_2"], padding=1)
    cat = jnp.concatenate([x0, x1, x2], axis=-1)
    return conv(cat, p["conv2d"], relu=True, skip=x, res_scale=scale)


def mixed_6a_fwd(x, p):
    x0 = conv(x, p["b0"], stride=2)
    x1 = conv(conv(conv(x, p["b1_0"]), p["b1_1"], padding=1), p["b1_2"], stride=2)
    x2 = maxpool(x, 3, 2)
    return jnp.concatenate([x0, x1, x2], axis=-1)


def block17_fwd(x, p, scale):
    f = conv(x, p["in_fused"])                 # 192 | 128
    x0 = f[..., :192]
    x1 = conv(f[..., 192:320], p["b1_1"], padding=(0, 3))
    x1 = conv(x1, p["b1_2"], padding=(3, 0))
    cat = jnp.concatenate([x0, x1], axis=-1)
    return conv(cat, p["conv2d"], relu=True, skip=x, res_scale=scale)


def mixed_7a_fwd(x, p):
    f = conv(x, p["in_fused"])                 # 256 | 256 | 256
    x0 = conv(f[..., :256], p["b0_1"], stride=2)
    x1 = conv(f[..., 256:512], p["b1_1"], stride=2)
    x2 = conv(conv(f[..., 512:768], p["b2_1"], padding=1), p["b2_2"], stride=2)
    x3 = maxpool(x, 3, 2)
    return jnp.concatenate([x0, x1, x2, x3], axis=-1)


def block8_fwd(x, p, scale, relu):
    f = conv(x, p["in_fused"])                 # 192 | 192
    x0 = f[..., :192]
    x1 = conv(f[..., 192:384], p["b1_1"], padding=(0, 1))
    x1 = conv(x1, p["b1_2"], padding=(1, 0))
    cat = jnp.concatenate([x0, x1], axis=-1)
    return conv(cat, p["conv2d"], relu=relu, skip=x, res_scale=scale)


def forward(params, x_nchw):
    x = jnp.transpose(x_nchw, (0, 2, 3, 1)).astype(jnp.bfloat16)   # NCHW -> NHWC
    x = conv(x, params["conv2d_1a"], stride=2)
    x = conv(x, params["conv2d_2a"])
    x = conv(x, params["conv2d_2b"], padding=1)
    x = maxpool(x, 3, 2)
    x = conv(x, params["conv2d_3b"])
    x = conv(x, params["conv2d_4a"])
    x = maxpool(x, 3, 2)
    x = mixed_5b_fwd(x, params["mixed_5b"])
    for p in params["repeat"]:
        x = block35_fwd(x, p, 0.17)
    x = mixed_6a_fwd(x, params["mixed_6a"])
    for p in params["repeat_1"]:
        x = block17_fwd(x, p, 0.1)
    x = mixed_7a_fwd(x, params["mixed_7a"])
    for p in params["repeat_2"]:
        x = block8_fwd(x, p, 0.2, True)
    x = block8_fwd(x, params["block8"], 1.0, False)
    x = conv(x, params["conv2d_7b_yy"], padding=1)
    # avgpool_1a = AvgPool2d(1): identity
    x = conv(x, params["conv1"])
    x = conv(x, params["conv2"], padding=1)
    x = conv(x, params["conv3"], padding=1)

    # 4 branch heads; their first 3x3 conv (1536->1536) is fused across branches.
    c1f = conv(x, params["c1_fused"], padding=1)        # 4 * 1536 channels
    outs = []
    for bi, br in enumerate(params["branches"]):
        y = c1f[..., bi * 1536:(bi + 1) * 1536]
        y = conv(y, br["c2"], padding=1)
        e = br["exp"]
        y = conv(y, e[0], padding=2, dilation=2)
        y = conv(y, e[1], padding=2, dilation=2)
        y = conv(y, e[2], padding=4, dilation=4)
        y = conv(y, e[3], padding=8, dilation=8)
        y = conv(y, e[4], padding=16, dilation=16)
        y = conv(y, e[5], padding=1)
        y = conv(y, e[6], padding=1, relu=False)
        y = head_pallas(y, B=2, S=14)
        outs.append(jnp.transpose(y, (0, 3, 1, 2)))     # back to NCHW, (N, 204, H, W)
    return outs


if __name__ == "__main__":
    pg = ParamGen(0)
    params = init_model(pg)
    # 75x75 is the minimum spatial size that survives the valid conv/pool stride chain
    # (module's nominal input is 448x448); batch=2, channels=3 as in PyTorch NCHW.
    x = jax.random.normal(jax.random.PRNGKey(0), (2, 3, 75, 75), jnp.float32)
    outs = forward(params, x)
    outs = jax.block_until_ready(outs)
    assert len(outs) == 4
    assert all(o.shape == (2, 204, 3, 3) for o in outs)
    assert all(bool(jnp.all(jnp.isfinite(o))) for o in outs)
    print("KERNEL_OK")
</pallas_src>

<mosaic_0001>
module attributes {stable_mosaic.version = 11 : i64} {
  func.func @_mm_kernel(%arg0: i32, %arg1: i32, %arg2: i32, %arg3: memref<320x27xbf16, #tpu.memory_space<vmem>>, %arg4: memref<27x128xbf16, #tpu.memory_space<vmem>>, %arg5: memref<2x128xf32, #tpu.memory_space<vmem>>, %arg6: memref<320x128xbf16, #tpu.memory_space<vmem>>, %arg7: memref<320x128xf32, #tpu.memory_space<vmem>>) attributes {dimension_semantics = [#tpu.dimension_semantics<parallel>, #tpu.dimension_semantics<parallel>, #tpu.dimension_semantics<arbitrary>], iteration_bounds = array<i64: 9, 1, 1>, scalar_prefetch = 0 : i64, scratch_operands = 1 : i64, tpu.core_type = #tpu.core_type<tc>, window_params = [{transform_indices = @transform_0, window_bounds = array<i64: 320, 27>}, {transform_indices = @transform_1, window_bounds = array<i64: 27, 128>}, {transform_indices = @transform_2, window_bounds = array<i64: 2, 128>}, {transform_indices = @transform_3, window_bounds = array<i64: 320, 128>}]} {
    %c0 = arith.constant 0 : index
    %c0_0 = arith.constant 0 : index
    %0 = vector.load %arg3[%c0, %c0_0] : memref<320x27xbf16, #tpu.memory_space<vmem>>, vector<320x27xbf16>
    %c0_1 = arith.constant 0 : index
    %c0_2 = arith.constant 0 : index
    %1 = vector.load %arg4[%c0_1, %c0_2] : memref<27x128xbf16, #tpu.memory_space<vmem>>, vector<27x128xbf16>
    %cst = arith.constant dense<0.000000e+00> : vector<320x128xf32>
    %2 = tpu.matmul %0, %1, %cst {dimension_numbers = #tpu.dot_dimension_numbers<[1], [0], [0], [1], [0, 0, 1, 1], [], []>} : vector<320x27xbf16>, vector<27x128xbf16>, vector<320x128xf32> -> vector<320x128xf32>
    %c0_3 = arith.constant 0 : index
    %c0_4 = arith.constant 0 : index
    %3 = vector.load %arg5[%c0_3, %c0_4] : memref<2x128xf32, #tpu.memory_space<vmem>>, vector<2x128xf32>
    %4 = vector.extract_strided_slice %3 {offsets = [0, 0], sizes = [1, 128], strides = [1, 1]} : vector<2x128xf32> to vector<1x128xf32>
    %5 = vector.broadcast %4 : vector<1x128xf32> to vector<320x128xf32>
    %6 = arith.mulf %2, %5 : vector<320x128xf32>
    %7 = vector.extract_strided_slice %3 {offsets = [1, 0], sizes = [1, 128], strides = [1, 1]} : vector<2x128xf32> to vector<1x128xf32>
    %8 = vector.broadcast %7 : vector<1x128xf32> to vector<320x128xf32>
    %9 = arith.addf %6, %8 : vector<320x128xf32>
    %cst_5 = arith.constant 0.000000e+00 : f32
    %10 = vector.broadcast %cst_5 : f32 to vector<320x128xf32>
    %11 = arith.maximumf %9, %10 : vector<320x128xf32>
    %12 = arith.truncf %11 : vector<320x128xf32> to vector<320x128xbf16>
    %c0_6 = arith.constant 0 : index
    %c0_7 = arith.constant 0 : index
    %13 = vector.load %arg6[%c0_6, %c0_7] : memref<320x128xbf16, #tpu.memory_space<vmem>>, vector<320x128xbf16>
    tpu.vector_store %arg6[%c0_6, %c0_7], %12 {strides = array<i32>} : memref<320x128xbf16, #tpu.memory_space<vmem>>, vector<320x128xbf16>,
    return
  }
  func.func @transform_0(%arg0: i32, %arg1: i32, %arg2: i32) -> (i32, i32) {
    %c0_i32 = arith.constant 0 : i32
    return %arg0, %arg2 : i32, i32
  }
  func.func @transform_1(%arg0: i32, %arg1: i32, %arg2: i32) -> (i32, i32) {
    %c0_i32 = arith.constant 0 : i32
    return %arg2, %arg1 : i32, i32
  }
  func.func @transform_2(%arg0: i32, %arg1: i32, %arg2: i32) -> (i32, i32) {
    %c0_i32 = arith.constant 0 : i32
    %c0_i32_0 = arith.constant 0 : i32
    return %c0_i32, %arg1 : i32, i32
  }
  func.func @transform_3(%arg0: i32, %arg1: i32, %arg2: i32) -> (i32, i32) {
    %c0_i32 = arith.constant 0 : i32
    return %arg0, %arg1 : i32, i32
  }
}

</mosaic_0001>

<llo_original>
// kernel: conv2d_pallas.1
$region0: #{conv2d_pallas.1}
  #allocation0 [shape = 'u32[]', space=smem, size = 0x4, offset = 0x4, fixed_abs, tag = 'smem constant byte address 0x4 - core index']
  #allocation1 [shape = 'u32[144,128]{1,0:T(1,128)}', space=vmem, size = 0x12000, scoped, tag = 'internal scratch']
  #allocation2 [shape = 'f32[320,128]{1,0:T(8,128)}', space=vmem, size = 0x28000, scoped, tag = 'scratch operand']
  %s0 = inlined_call_operand.vmem [shape: bf16[2880,27], index: 0, kind: input, shape index: {}]
  %s1 = inlined_call_operand.vmem [shape: bf16[27,128], index: 1, kind: input, shape index: {}]
  %s2 = inlined_call_operand.vmem [shape: f32[2,128], index: 2, kind: input, shape index: {}]
  %s3 = inlined_call_operand.vmem [shape: bf16[2880,128], index: 3, kind: output, shape index: {}]
  %s4 = sld [smem:[#allocation0]]
  $region45: #{conv2d_pallas.1} parent=0
    _
  %s6 = ssub.s32 1, %s4
  %s7 = scalar_select 0, %s6, %s4
  loop: start=0, step=1, limit=11
  $region2: #{conv2d_pallas.1} parent=0 // loop_pre_header
    _
  $region3: #{conv2d_pallas.1} parent=0 // loop_header
    %s9 = sphi 0, %s13
    %p10 = scmp.ge.s32.totalorder %s9, 11
    %s16 = sphi 0, %s35
    %s17 = sphi 0, %s31
    %s18 = sphi 0, %s27
    %s19 = sphi 0, %s16
    %s20 = sphi 0, %s17
    %s21 = sphi 0, %s18
    %s22 = sphi 0, %s19
    %s23 = sphi 0, %s20
    %s24 = sphi 0, %s21
    %s40 = sphi 0, %s42
    %s43 = sphi 0, %s40
    %s44 = sphi 0, %s43
    %s60 = sphi 0, %s44
    %s68 = sphi 0, %s70
    %s71 = sphi 0, %s68
    %s72 = sphi 0, %s71
    %s88 = sphi 0, %s72
    %s94 = sphi 0, %s96
    %s97 = sphi 0, %s94
    %s98 = sphi 0, %s97
    %s114 = sphi 0, %s98
    %s122 = sphi 0, %s124
    %s125 = sphi 0, %s122
    %s126 = sphi 0, %s125
    %s142 = sphi 0, %s126
  $region4: #{conv2d_pallas.1} parent=0 // loop_header_branch
    %12 = sbr.rel (%p10) target = $region8
  $region5: #{conv2d_pallas.1} parent=0 // loop_body
    %s14 = ssub.s32 %s9, 1
    %s15 = ssub.s32 %s9, 2
    %s25 = sadd.s32 1, %s18
    %p26 = scmp.ge.s32.totalorder %s25, 1
    %s27 = scalar_select %p26, 0, %s25
    %s28 = sadd.s32 1, %s17
    %s29 = scalar_select %p26, %s28, %s17
    %p30 = scmp.ge.s32.totalorder %s29, 1
    %s31 = scalar_select %p30, 0, %s29
    %s32 = sadd.s32 1, %s16
    %s33 = scalar_select %p30, %s32, %s16
    %p34 = scmp.ge.s32.totalorder %s33, 9
    %s35 = scalar_select %p34, 0, %s33
    %s36 = ssub.s32 %s16, %s35
    %s37 = ssub.s32 %s18, %s27
    %s38 = sor.u32 %s36, %s37
    %p39 = scmp.eq.s32.totalorder %s38, 0
    %s41 = sadd.s32 %s40, 1
    %s42 = scalar_select %p39, %s40, %s41
    %p45 = pneg %p39
    %p46 = scmp.eq.s32.totalorder %s9, 8
    %p47 = por %p45, %p46
    %p48 = scmp.ne.s32.totalorder %s40, %s43
    %p49 = scmp.eq.s32.totalorder %s9, 0
    %p50 = por %p48, %p49
    %p51 = scmp.ne.s32.totalorder %s40, %s43
    %p52 = scmp.eq.s32.totalorder %s14, 8
    %p53 = por %p51, %p52
    %p54 = scmp.ne.s32.totalorder %s43, %s44
    %p55 = scmp.eq.s32.totalorder %s14, 0
    %p56 = por %p54, %p55
    %p57 = scmp.ne.s32.totalorder %s43, %s44
    %p58 = scmp.eq.s32.totalorder %s15, 8
    %p59 = por %p57, %p58
    %p61 = scmp.ne.s32.totalorder %s44, %s60
    %p62 = scmp.eq.s32.totalorder %s15, 0
    %p63 = por %p61, %p62
    %s64 = ssub.s32 %s18, %s27
    %s65 = ssub.s32 %s17, %s31
    %s66 = sor.u32 %s64, %s65
    %p67 = scmp.eq.s32.totalorder %s66, 0
    %s69 = sadd.s32 %s68, 1
    %s70 = scalar_select %p67, %s68, %s69
    %p73 = pneg %p67
    %p74 = scmp.eq.s32.totalorder %s9, 8
    %p75 = por %p73, %p74
    %p76 = scmp.ne.s32.totalorder %s68, %s71
    %p77 = scmp.eq.s32.totalorder %s9, 0
    %p78 = por %p76, %p77
    %p79 = scmp.ne.s32.totalorder %s68, %s71
    %p80 = scmp.eq.s32.totalorder %s14, 8
    %p81 = por %p79, %p80
    %p82 = scmp.ne.s32.totalorder %s71, %s72
    %p83 = scmp.eq.s32.totalorder %s14, 0
    %p84 = por %p82, %p83
    %p85 = scmp.ne.s32.totalorder %s71, %s72
    %p86 = scmp.eq.s32.totalorder %s15, 8
    %p87 = por %p85, %p86
    %p89 = scmp.ne.s32.totalorder %s72, %s88
    %p90 = scmp.eq.s32.totalorder %s15, 0
    %p91 = por %p89, %p90
    %s92 = ssub.s32 %s17, %s31
    %p93 = scmp.eq.s32.totalorder %s92, 0
    %s95 = sadd.s32 %s94, 1
    %s96 = scalar_select %p93, %s94, %s95
    %p99 = pneg %p93
    %p100 = scmp.eq.s32.totalorder %s9, 8
    %p101 = por %p99, %p100
    %p102 = scmp.ne.s32.totalorder %s94, %s97
    %p103 = scmp.eq.s32.totalorder %s9, 0
    %p104 = por %p102, %p103
    %p105 = scmp.ne.s32.totalorder %s94, %s97
    %p106 = scmp.eq.s32.totalorder %s14, 8
    %p107 = por %p105, %p106
    %p108 = scmp.ne.s32.totalorder %s97, %s98
    %p109 = scmp.eq.s32.totalorder %s14, 0
    %p110 = por %p108, %p109
    %p111 = scmp.ne.s32.totalorder %s97, %s98
    %p112 = scmp.eq.s32.totalorder %s15, 8
    %p113 = por %p111, %p112
    %p115 = scmp.ne.s32.totalorder %s98, %s114
    %p116 = scmp.eq.s32.totalorder %s15, 0
    %p117 = por %p115, %p116
    %s118 = ssub.s32 %s16, %s35
    %s119 = ssub.s32 %s17, %s31
    %s120 = sor.u32 %s118, %s119
    %p121 = scmp.eq.s32.totalorder %s120, 0
    %s123 = sadd.s32 %s122, 1
    %s124 = scalar_select %p121, %s122, %s123
    %p127 = pneg %p121
    %p128 = scmp.eq.s32.totalorder %s9, 8
    %p129 = por %p127, %p128
    %p130 = scmp.ne.s32.totalorder %s122, %s125
    %p131 = scmp.eq.s32.totalorder %s9, 0
    %p132 = por %p130, %p131
    %p133 = scmp.ne.s32.totalorder %s122, %s125
    %p134 = scmp.eq.s32.totalorder %s14, 8
    %p135 = por %p133, %p134
    %p136 = scmp.ne.s32.totalorder %s125, %s126
    %p137 = scmp.eq.s32.totalorder %s14, 0
    %p138 = por %p136, %p137
    %p139 = scmp.ne.s32.totalorder %s125, %s126
    %p140 = scmp.eq.s32.totalorder %s15, 8
    %p141 = por %p139, %p140
    %p143 = scmp.ne.s32.totalorder %s126, %s142
    %p144 = scmp.eq.s32.totalorder %s15, 0
    %p145 = por %p143, %p144
    %p146 = scmp.le.s32.totalorder 1, %s9
    %p147 = scmp.lt.s32.totalorder %s9, 10
    %p148 = pnand %p146, %p147
    %p149 = pneg %p148
    // Predicated region
    $region9: #{conv2d_pallas.1} parent=5 // pred_check
      _
    $region10: #{conv2d_pallas.1} parent=5 // pred_check_branch
      %151 = sbr.rel (%p148) target = $region12
    $region11: #{conv2d_pallas.1} parent=5 // pred_region
      %s152 = ssub.s32 %s9, 1
      // Predicated region
      $region13: #{conv2d_pallas.1} parent=11 // pred_check
        %p153 = pneg %p84
      $region14: #{conv2d_pallas.1} parent=11 // pred_check_branch
        %155 = sbr.rel (%p153) target = $region16
      $region15: #{conv2d_pallas.1} parent=11 // pred_region
        %s156 = smul.u32 4, %s21
        %p157 = scmp.lt.s32.totalorder %s156, 3
        %s158 = scalar_select %p157, %s156, 3
        %p159 = scmp.lt.s32.totalorder %s20, 0
        %s160 = scalar_select %p159, %s20, 0
        %s161 = sadd.s32 %s160, %s158
        %s162 = smul.addr %s161, 4
        %s163 = scalar_lea.vmem %s1, %s162
        %s164 = smul.u32 4, %s21
      $region16: #{conv2d_pallas.1} parent=11 // pred_fallthru
        _
      // Predicated region
      $region17: #{conv2d_pallas.1} parent=11 // pred_check
        %p165 = pneg %p110
      $region18: #{conv2d_pallas.1} parent=11 // pred_check_branch
        %167 = sbr.rel (%p165) target = $region20
      $region19: #{conv2d_pallas.1} parent=11 // pred_region
        %p168 = scmp.lt.s32.totalorder %s20, 0
        %s169 = scalar_select %p168, %s20, 0
        %s170 = smul.addr %s169, 2
        %s171 = scalar_lea.vmem %s2, %s170
      $region20: #{conv2d_pallas.1} parent=11 // pred_fallthru
        _
    $region12: #{conv2d_pallas.1} parent=5 // pred_fallthru
      _
    %p172 = scmp.lt.s32.totalorder %s9, 9
    // Predicated region
    $region21: #{conv2d_pallas.1} parent=5 // pred_check
      %p173 = pneg %p172
    $region22: #{conv2d_pallas.1} parent=5 // pred_check_branch
      %175 = sbr.rel (%p173) target = $region24
    $region23: #{conv2d_pallas.1} parent=5 // pred_region
      // Predicated region
      $region25: #{conv2d_pallas.1} parent=23 // pred_check
        %p176 = pneg %p50
      $region26: #{conv2d_pallas.1} parent=23 // pred_check_branch
        %178 = sbr.rel (%p176) target = $region28
      $region27: #{conv2d_pallas.1} parent=23 // pred_region
        %s179 = smul.u32 40, %s16
        %p180 = scmp.lt.s32.totalorder %s179, 359
        %s181 = scalar_select %p180, %s179, 359
        %p182 = scmp.lt.s32.totalorder %s18, 0
        %s183 = scalar_select %p182, %s18, 0
        %s184 = sadd.s32 %s183, %s181
        %s185 = smul.addr %s184, 4
        %s186 = scalar_lea.vmem %s0, %s185
        %s187 = smul.u32 40, %s16
      $region28: #{conv2d_pallas.1} parent=23 // pred_fallthru
        _
    $region24: #{conv2d_pallas.1} parent=5 // pred_fallthru
      _
    %p188 = scmp.le.s32.totalorder 1, %s9
    %p189 = scmp.lt.s32.totalorder %s9, 10
    %p190 = pnand %p188, %p189
    %p191 = pneg %p190
    // Predicated region
    $region29: #{conv2d_pallas.1} parent=5 // pred_check
      _
    $region30: #{conv2d_pallas.1} parent=5 // pred_check_branch
      %193 = sbr.rel (%p190) target = $region32
    $region31: #{conv2d_pallas.1} parent=5 // pred_region
      %s194 = ssub.s32 %s9, 1
      %s195 = smul.u32 40, %s19
      %p196 = scmp.lt.s32.totalorder %s195, 359
      %s197 = scalar_select %p196, %s195, 359
      %p198 = scmp.lt.s32.totalorder %s21, 0
      %s199 = scalar_select %p198, %s21, 0
      %s200 = sadd.s32 %s199, %s197
      %s201 = smul.addr %s200, 4
      %s202 = scalar_lea.vmem %s0, %s201
      %p203 = pneg %p56
      %p204 = pneg %p53
      %s205 = smul.u32 4, %s21
      %p206 = scmp.lt.s32.totalorder %s205, 3
      %s207 = scalar_select %p206, %s205, 3
      %p208 = scmp.lt.s32.totalorder %s20, 0
      %s209 = scalar_select %p208, %s20, 0
      %s210 = sadd.s32 %s209, %s207
      %s211 = smul.addr %s210, 4
      %s212 = scalar_lea.vmem %s1, %s211
      %p213 = pneg %p84
      %p214 = pneg %p81
      %p215 = scmp.lt.s32.totalorder %s20, 0
      %s216 = scalar_select %p215, %s20, 0
      %s217 = smul.addr %s216, 2
      %s218 = scalar_lea.vmem %s2, %s217
      %p219 = pneg %p110
      %p220 = pneg %p107
      %p221 = pneg %p138
      %p222 = pneg %p135
      %s223 = smul.u32 40, %s19
      %p224 = scmp.lt.s32.totalorder %s223, 359
      %s225 = scalar_select %p224, %s223, 359
      %p226 = scmp.lt.s32.totalorder %s20, 0
      %s227 = scalar_select %p226, %s20, 0
      %s228 = sadd.s32 %s227, %s225
      %s229 = smul.addr %s228, 4
      %s230 = scalar_lea.vmem %s3, %s229
      %s231 = smul.u32 40, %s19
      %p232 = scmp.lt.s32.totalorder %s231, 359
      %s233 = scalar_select %p232, %s231, 359
      %p234 = scmp.lt.s32.totalorder %s21, 0
      %s235 = scalar_select %p234, %s21, 0
      %s236 = sadd.s32 %s235, %s233
      %s237 = smul.addr %s236, 4
      %s238 = scalar_lea.vmem %s0, %s237
      %s239 = smul.u32 40, %s19
      %s240 = smul.u32 4, %s21
      %p241 = scmp.lt.s32.totalorder %s240, 3
      %s242 = scalar_select %p241, %s240, 3
      %p243 = scmp.lt.s32.totalorder %s20, 0
      %s244 = scalar_select %p243, %s20, 0
      %s245 = sadd.s32 %s244, %s242
      %s246 = smul.addr %s245, 4
      %s247 = scalar_lea.vmem %s1, %s246
      %s248 = smul.u32 4, %s21
      %p249 = scmp.lt.s32.totalorder %s20, 0
      %s250 = scalar_select %p249, %s20, 0
      %s251 = smul.addr %s250, 2
      %s252 = scalar_lea.vmem %s2, %s251
      %s253 = smul.u32 40, %s19
      %p254 = scmp.lt.s32.totalorder %s253, 359
      %s255 = scalar_select %p254, %s253, 359
      %p256 = scmp.lt.s32.totalorder %s20, 0
      %s257 = scalar_select %p256, %s20, 0
      %s258 = sadd.s32 %s257, %s255
      %s259 = smul.addr %s258, 4
      %s260 = scalar_lea.vmem %s3, %s259
      %s261 = smul.u32 40, %s19
      %v263 = vld [vmem:[%s238] sm:$0xf]
      %v264 = vld [vmem:[%s238 + $0x4] sm:$0xf]
      %v265 = vld [vmem:[%s238 + $0x8] sm:$0xf]
      %v266 = vld [vmem:[%s238 + $0xc] sm:$0xf]
      %v267 = vld [vmem:[%s238 + $0x10] sm:$0xf]
      %v268 = vld [vmem:[%s238 + $0x14] sm:$0xf]
      %v269 = vld [vmem:[%s238 + $0x18] sm:$0xf]
      %v270 = vld [vmem:[%s238 + $0x1c] sm:$0xf]
      %v271 = vld [vmem:[%s238 + $0x20] sm:$0xf]
      %v272 = vld [vmem:[%s238 + $0x24] sm:$0xf]
      %v273 = vld [vmem:[%s238 + $0x28] sm:$0xf]
      %v274 = vld [vmem:[%s238 + $0x2c] sm:$0xf]
      %v275 = vld [vmem:[%s238 + $0x30] sm:$0xf]
      %v276 = vld [vmem:[%s238 + $0x34] sm:$0xf]
      %v277 = vld [vmem:[%s238 + $0x38] sm:$0xf]
      %v278 = vld [vmem:[%s238 + $0x3c] sm:$0xf]
      %v279 = vld [vmem:[%s238 + $0x40] sm:$0xf]
      %v280 = vld [vmem:[%s238 + $0x44] sm:$0xf]
      %v281 = vld [vmem:[%s238 + $0x48] sm:$0xf]
      %v282 = vld [vmem:[%s238 + $0x4c] sm:$0xf]
      %v283 = vld [vmem:[%s238 + $0x50] sm:$0xf]
      %v284 = vld [vmem:[%s238 + $0x54] sm:$0xf]
      %v285 = vld [vmem:[%s238 + $0x58] sm:$0xf]
      %v286 = vld [vmem:[%s238 + $0x5c] sm:$0xf]
      %v287 = vld [vmem:[%s238 + $0x60] sm:$0xf]
      %v288 = vld [vmem:[%s238 + $0x64] sm:$0xf]
      %v289 = vld [vmem:[%s238 + $0x68] sm:$0xf]
      %v290 = vld [vmem:[%s238 + $0x6c] sm:$0xf]
      %v291 = vld [vmem:[%s238 + $0x70] sm:$0xf]
      %v292 = vld [vmem:[%s238 + $0x74] sm:$0xf]
      %v293 = vld [vmem:[%s238 + $0x78] sm:$0xf]
      %v294 = vld [vmem:[%s238 + $0x7c] sm:$0xf]
      %v295 = vld [vmem:[%s238 + $0x80] sm:$0xf]
      %v296 = vld [vmem:[%s238 + $0x84] sm:$0xf]
      %v297 = vld [vmem:[%s238 + $0x88] sm:$0xf]
      %v298 = vld [vmem:[%s238 + $0x8c] sm:$0xf]
      %v299 = vld [vmem:[%s238 + $0x90] sm:$0xf]
      %v300 = vld [vmem:[%s238 + $0x94] sm:$0xf]
      %v301 = vld [vmem:[%s238 + $0x98] sm:$0xf]
      %v302 = vld [vmem:[%s238 + $0x9c] sm:$0xf]
      %v303 = vld [vmem:[%s247] sm:$0xf]
      %v304 = vld [vmem:[%s247 + $0x4] sm:$0xf]
      %v305 = vld [vmem:[%s247 + $0x8] sm:$0xf]
      %v306 = vld [vmem:[%s247 + $0xc] sm:$0x3]
      %v347 = vunpack.c.l.b16 %v263
      %v348 = vunpack.c.l.b16 %v264
      %v349 = vunpack.c.l.b16 %v265
      %v350 = vunpack.c.l.b16 %v266
      %v351 = vunpack.c.l.b16 %v267
      %v352 = vunpack.c.l.b16 %v268
      %v353 = vunpack.c.l.b16 %v269
      %v354 = vunpack.c.l.b16 %v270
      %v355 = vunpack.c.l.b16 %v271
      %v356 = vunpack.c.l.b16 %v272
      %v357 = vunpack.c.l.b16 %v273
      %v358 = vunpack.c.l.b16 %v274
      %v359 = vunpack.c.l.b16 %v275
      %v360 = vunpack.c.l.b16 %v276
      %v361 = vunpack.c.l.b16 %v277
      %v362 = vunpack.c.l.b16 %v278
      %v363 = vunpack.c.l.b16 %v279
      %v364 = vunpack.c.l.b16 %v280
      %v365 = vunpack.c.l.b16 %v281
      %v366 = vunpack.c.l.b16 %v282
      %v367 = vunpack.c.l.b16 %v283
      %v368 = vunpack.c.l.b16 %v284
      %v369 = vunpack.c.l.b16 %v285
      %v370 = vunpack.c.l.b16 %v286
      %v371 = vunpack.c.l.b16 %v287
      %v372 = vunpack.c.l.b16 %v288
      %v373 = vunpack.c.l.b16 %v289
      %v374 = vunpack.c.l.b16 %v290
      %v375 = vunpack.c.l.b16 %v291
      %v376 = vunpack.c.l.b16 %v292
      %v377 = vunpack.c.l.b16 %v293
      %v378 = vunpack.c.l.b16 %v294
      %v379 = vunpack.c.l.b16 %v295
      %v380 = vunpack.c.l.b16 %v296
      %v381 = vunpack.c.l.b16 %v297
      %v382 = vunpack.c.l.b16 %v298
      %v383 = vunpack.c.l.b16 %v299
      %v384 = vunpack.c.l.b16 %v300
      %v385 = vunpack.c.l.b16 %v301
      %v386 = vunpack.c.l.b16 %v302
      %v387 = vpack.c.b16 %v348, %v347
      %v388 = vpack.c.b16 %v350, %v349
      %v389 = vpack.c.b16 %v352, %v351
      %v390 = vpack.c.b16 %v354, %v353
      %v391 = vpack.c.b16 %v356, %v355
      %v392 = vpack.c.b16 %v358, %v357
      %v393 = vpack.c.b16 %v360, %v359
      %v394 = vpack.c.b16 %v362, %v361
      %v395 = vpack.c.b16 %v364, %v363
      %v396 = vpack.c.b16 %v366, %v365
      %v397 = vpack.c.b16 %v368, %v367
      %v398 = vpack.c.b16 %v370, %v369
      %v399 = vpack.c.b16 %v372, %v371
      %v400 = vpack.c.b16 %v374, %v373
      %v401 = vpack.c.b16 %v376, %v375
      %v402 = vpack.c.b16 %v378, %v377
      %v403 = vpack.c.b16 %v380, %v379
      %v404 = vpack.c.b16 %v382, %v381
      %v405 = vpack.c.b16 %v384, %v383
      %v406 = vpack.c.b16 %v386, %v385
      %v411 = vunpack.c.l.b16 %v303
      %v412 = vunpack.c.l.b16 %v304
      %v413 = vunpack.c.l.b16 %v305
      %v414 = vunpack.c.l.b16 %v306
      %v415 = vpack.c.b16 %v412, %v411
      %v416 = vpack.c.b16 %v414, %v413
      %vm418 = vcmask 220160
      %v420 = vsel %vm418, %v387, 0
      %v423 = vsel %vm418, %v388, 0
      %v426 = vsel %vm418, %v389, 0
      %v429 = vsel %vm418, %v390, 0
      %v432 = vsel %vm418, %v391, 0
      %v435 = vsel %vm418, %v392, 0
      %v438 = vsel %vm418, %v393, 0
      %v441 = vsel %vm418, %v394, 0
      %v444 = vsel %vm418, %v395, 0
      %v447 = vsel %vm418, %v396, 0
      %v450 = vsel %vm418, %v397, 0
      %v453 = vsel %vm418, %v398, 0
      %v456 = vsel %vm418, %v399, 0
      %v459 = vsel %vm418, %v400, 0
      %v462 = vsel %vm418, %v401, 0
      %v465 = vsel %vm418, %v402, 0
      %v468 = vsel %vm418, %v403, 0
      %v471 = vsel %vm418, %v404, 0
      %v474 = vsel %vm418, %v405, 0
      %v477 = vsel %vm418, %v406, 0
      %vm479 = vcmask 1044480
      %vm480 = vcmask 1045504
      %v481 = vsel %vm479, 4294967295, 65535
      %v482 = vsel %vm480, %v481, 0
      %v484 = vand.u32 %v416, %v482
      %486 = vmatprep.subr.bf16.mxu0 0
      %487 = vmatpush1.bf16.msra.mxu0 0
      %488 = vmatprep.subr.bf16.mxu0 0
      %489 = vmatpush1.bf16.msra.mxu0 0
      %490 = vmatprep.subr.bf16.mxu0 0
      %491 = vmatpush1.bf16.msra.mxu0 0
      %492 = vmatprep.subr.bf16.mxu0 0
      %493 = vmatpush1.bf16.msra.mxu0 0
      %494 = vmatprep.subr.bf16.mxu0 0
      %495 = vmatpush1.bf16.msra.mxu0 0
      %496 = vmatprep.subr.bf16.mxu0 0
      %497 = vmatpush1.bf16.msra.mxu0 0
      %498 = vmatprep.subr.bf16.mxu0 0
      %499 = vmatpush1.bf16.msra.mxu0 %v484
      %500 = vmatprep.subr.bf16.mxu0 0
      %501 = vmatpush1.bf16.msra.mxu0 %v415
      %502 = vmatprep.subr.bf16.mxu0 0
      %503 = vmatpush2.bf16.msra.mxu0 0
      %504 = vmatprep.subr.bf16.mxu0 0
      %505 = vmatpush2.bf16.msra.mxu0 0
      %506 = vmatprep.subr.bf16.mxu0 0
      %507 = vmatpush2.bf16.msra.mxu0 0
      %508 = vmatprep.subr.bf16.mxu0 0
      %509 = vmatpush2.bf16.msra.mxu0 0
      %510 = vmatprep.subr.bf16.mxu0 0
      %511 = vmatpush2.bf16.msra.mxu0 0
      %512 = vmatprep.subr.bf16.mxu0 0
      %513 = vmatpush2.bf16.msra.mxu0 0
      %514 = vmatprep.subr.bf16.mxu0 0
      %515 = vmatpush2.bf16.msra.mxu0 0
      %516 = vmatprep.subr.bf16.mxu0 0
      %517 = vmatpush2.bf16.msra.mxu0 0
      %518 = vmatprep.mubr.bf16.mxu0 0
      %519 = vmatmul.mubr.bf16.gmra.mxu0 %v420
      %v520 = vpop.f32.mrf.mxu0
      %v521 = vadd.f32 0.0, %v520
      %v522 = vpop.f32.mrf.mxu0
      %v523 = vpop.f32.mrf.mxu0
      %v524 = vadd.f32 0.0, %v523
      %v525 = vpop.f32.mrf.mxu0
      %526 = vmatprep.mubr.bf16.mxu0 0
      %527 = vmatmul.mubr.bf16.gmra.mxu0 %v423
      %v528 = vpop.f32.mrf.mxu0
      %v529 = vadd.f32 0.0, %v528
      %v530 = vpop.f32.mrf.mxu0
      %v531 = vpop.f32.mrf.mxu0
      %v532 = vadd.f32 0.0, %v531
      %v533 = vpop.f32.mrf.mxu0
      %534 = vmatprep.mubr.bf16.mxu0 0
      %535 = vmatmul.mubr.bf16.gmra.mxu0 %v426
      %v536 = vpop.f32.mrf.mxu0
      %v537 = vadd.f32 0.0, %v536
      %v538 = vpop.f32.mrf.mxu0
      %v539 = vpop.f32.mrf.mxu0
      %v540 = vadd.f32 0.0, %v539
      %v541 = vpop.f32.mrf.mxu0
      %542 = vmatprep.mubr.bf16.mxu0 0
      %543 = vmatmul.mubr.bf16.gmra.mxu0 %v429
      %v544 = vpop.f32.mrf.mxu0
      %v545 = vadd.f32 0.0, %v544
      %v546 = vpop.f32.mrf.mxu0
      %v547 = vpop.f32.mrf.mxu0
      %v548 = vadd.f32 0.0, %v547
      %v549 = vpop.f32.mrf.mxu0
      %550 = vmatprep.mubr.bf16.mxu0 0
      %551 = vmatmul.mubr.bf16.gmra.mxu0 %v432
      %v552 = vpop.f32.mrf.mxu0
      %v553 = vadd.f32 0.0, %v552
      %v554 = vpop.f32.mrf.mxu0
      %v555 = vpop.f32.mrf.mxu0
      %v556 = vadd.f32 0.0, %v555
      %v557 = vpop.f32.mrf.mxu0
      %558 = vmatprep.mubr.bf16.mxu0 0
      %559 = vmatmul.mubr.bf16.gmra.mxu0 %v435
      %v560 = vpop.f32.mrf.mxu0
      %v561 = vadd.f32 0.0, %v560
      %v562 = vpop.f32.mrf.mxu0
      %v563 = vpop.f32.mrf.mxu0
      %v564 = vadd.f32 0.0, %v563
      %v565 = vpop.f32.mrf.mxu0
      %566 = vmatprep.mubr.bf16.mxu0 0
      %567 = vmatmul.mubr.bf16.gmra.mxu0 %v438
      %v568 = vpop.f32.mrf.mxu0
      %v569 = vadd.f32 0.0, %v568
      %v570 = vpop.f32.mrf.mxu0
      %v571 = vpop.f32.mrf.mxu0
      %v572 = vadd.f32 0.0, %v571
      %v573 = vpop.f32.mrf.mxu0
      %574 = vmatprep.mubr.bf16.mxu0 0
      %575 = vmatmul.mubr.bf16.gmra.mxu0 %v441
      %v576 = vpop.f32.mrf.mxu0
      %v577 = vadd.f32 0.0, %v576
      %v578 = vpop.f32.mrf.mxu0
      %v579 = vpop.f32.mrf.mxu0
      %v580 = vadd.f32 0.0, %v579
      %v581 = vpop.f32.mrf.mxu0
      %582 = vmatprep.mubr.bf16.mxu0 0
      %583 = vmatmul.mubr.bf16.gmra.mxu0 %v444
      %v584 = vpop.f32.mrf.mxu0
      %v585 = vadd.f32 0.0, %v584
      %v586 = vpop.f32.mrf.mxu0
      %v587 = vpop.f32.mrf.mxu0
      %v588 = vadd.f32 0.0, %v587
      %v589 = vpop.f32.mrf.mxu0
      %590 = vmatprep.mubr.bf16.mxu0 0
      %591 = vmatmul.mubr.bf16.gmra.mxu0 %v447
      %v592 = vpop.f32.mrf.mxu0
      %v593 = vadd.f32 0.0, %v592
      %v594 = vpop.f32.mrf.mxu0
      %v595 = vpop.f32.mrf.mxu0
      %v596 = vadd.f32 0.0, %v595
      %v597 = vpop.f32.mrf.mxu0
      %598 = vmatprep.mubr.bf16.mxu0 0
      %599 = vmatmul.mubr.bf16.gmra.mxu0 %v450
      %v600 = vpop.f32.mrf.mxu0
      %v601 = vadd.f32 0.0, %v600
      %v602 = vpop.f32.mrf.mxu0
      %v603 = vpop.f32.mrf.mxu0
      %v604 = vadd.f32 0.0, %v603
      %v605 = vpop.f32.mrf.mxu0
      %606 = vmatprep.mubr.bf16.mxu0 0
      %607 = vmatmul.mubr.bf16.gmra.mxu0 %v453
      %v608 = vpop.f32.mrf.mxu0
      %v609 = vadd.f32 0.0, %v608
      %v610 = vpop.f32.mrf.mxu0
      %v611 = vpop.f32.mrf.mxu0
      %v612 = vadd.f32 0.0, %v611
      %v613 = vpop.f32.mrf.mxu0
      %614 = vmatprep.mubr.bf16.mxu0 0
      %615 = vmatmul.mubr.bf16.gmra.mxu0 %v456
      %v616 = vpop.f32.mrf.mxu0
      %v617 = vadd.f32 0.0, %v616
      %v618 = vpop.f32.mrf.mxu0
      %v619 = vpop.f32.mrf.mxu0
      %v620 = vadd.f32 0.0, %v619
      %v621 = vpop.f32.mrf.mxu0
      %622 = vmatprep.mubr.bf16.mxu0 0
      %623 = vmatmul.mubr.bf16.gmra.mxu0 %v459
      %v624 = vpop.f32.mrf.mxu0
      %v625 = vadd.f32 0.0, %v624
      %v626 = vpop.f32.mrf.mxu0
      %v627 = vpop.f32.mrf.mxu0
      %v628 = vadd.f32 0.0, %v627
      %v629 = vpop.f32.mrf.mxu0
      %630 = vmatprep.mubr.bf16.mxu0 0
      %631 = vmatmul.mubr.bf16.gmra.mxu0 %v462
      %v632 = vpop.f32.mrf.mxu0
      %v633 = vadd.f32 0.0, %v632
      %v634 = vpop.f32.mrf.mxu0
      %v635 = vpop.f32.mrf.mxu0
      %v636 = vadd.f32 0.0, %v635
      %v637 = vpop.f32.mrf.mxu0
      %638 = vmatprep.mubr.bf16.mxu0 0
      %639 = vmatmul.mubr.bf16.gmra.mxu0 %v465
      %v640 = vpop.f32.mrf.mxu0
      %v641 = vadd.f32 0.0, %v640
      %v642 = vpop.f32.mrf.mxu0
      %v643 = vpop.f32.mrf.mxu0
      %v644 = vadd.f32 0.0, %v643
      %v645 = vpop.f32.mrf.mxu0
      %646 = vmatprep.mubr.bf16.mxu0 0
      %647 = vmatmul.mubr.bf16.gmra.mxu0 %v468
      %v648 = vpop.f32.mrf.mxu0
      %v649 = vadd.f32 0.0, %v648
      %v650 = vpop.f32.mrf.mxu0
      %v651 = vpop.f32.mrf.mxu0
      %v652 = vadd.f32 0.0, %v651
      %v653 = vpop.f32.mrf.mxu0
      %654 = vmatprep.mubr.bf16.mxu0 0
      %655 = vmatmul.mubr.bf16.gmra.mxu0 %v471
      %v656 = vpop.f32.mrf.mxu0
      %v657 = vadd.f32 0.0, %v656
      %v658 = vpop.f32.mrf.mxu0
      %v659 = vpop.f32.mrf.mxu0
      %v660 = vadd.f32 0.0, %v659
      %v661 = vpop.f32.mrf.mxu0
      %662 = vmatprep.mubr.bf16.mxu0 0
      %663 = vmatmul.mubr.bf16.gmra.mxu0 %v474
      %v664 = vpop.f32.mrf.mxu0
      %v665 = vadd.f32 0.0, %v664
      %v666 = vpop.f32.mrf.mxu0
      %v667 = vpop.f32.mrf.mxu0
      %v668 = vadd.f32 0.0, %v667
      %v669 = vpop.f32.mrf.mxu0
      %670 = vmatprep.mubr.bf16.mxu0 0
      %671 = vmatmul.mubr.bf16.gmra.mxu0 %v477
      %v672 = vpop.f32.mrf.mxu0
      %v673 = vadd.f32 0.0, %v672
      %v674 = vpop.f32.mrf.mxu0
      %v675 = vpop.f32.mrf.mxu0
      %v676 = vadd.f32 0.0, %v675
      %v677 = vpop.f32.mrf.mxu0
      %678 = vdwg.mxu0
      %v679 = vld [vmem:[%s252] sm:$0x3]
      %v680 = vlaneseq
      %v681 = vshrl.u32 %v680, 7
      %v682 = vsub.s32 0, %v681
      %v683 = vrot.slane %v679, %v682
      %v684 = vmul.f32 %v521, %v683
      %v685 = vmul.f32 %v524, %v683
      %v686 = vmul.f32 %v529, %v683
      %v687 = vmul.f32 %v532, %v683
      %v688 = vmul.f32 %v537, %v683
      %v689 = vmul.f32 %v540, %v683
      %v690 = vmul.f32 %v545, %v683
      %v691 = vmul.f32 %v548, %v683
      %v692 = vmul.f32 %v553, %v683
      %v693 = vmul.f32 %v556, %v683
      %v694 = vmul.f32 %v561, %v683
      %v695 = vmul.f32 %v564, %v683
      %v696 = vmul.f32 %v569, %v683
      %v697 = vmul.f32 %v572, %v683
      %v698 = vmul.f32 %v577, %v683
      %v699 = vmul.f32 %v580, %v683
      %v700 = vmul.f32 %v585, %v683
      %v701 = vmul.f32 %v588, %v683
      %v702 = vmul.f32 %v593, %v683
      %v703 = vmul.f32 %v596, %v683
      %v704 = vmul.f32 %v601, %v683
      %v705 = vmul.f32 %v604, %v683
      %v706 = vmul.f32 %v609, %v683
      %v707 = vmul.f32 %v612, %v683
      %v708 = vmul.f32 %v617, %v683
      %v709 = vmul.f32 %v620, %v683
      %v710 = vmul.f32 %v625, %v683
      %v711 = vmul.f32 %v628, %v683
      %v712 = vmul.f32 %v633, %v683
      %v713 = vmul.f32 %v636, %v683
      %v714 = vmul.f32 %v641, %v683
      %v715 = vmul.f32 %v644, %v683
      %v716 = vmul.f32 %v649, %v683
      %v717 = vmul.f32 %v652, %v683
      %v718 = vmul.f32 %v657, %v683
      %v719 = vmul.f32 %v660, %v683
      %v720 = vmul.f32 %v665, %v683
      %v721 = vmul.f32 %v668, %v683
      %v722 = vmul.f32 %v673, %v683
      %v723 = vmul.f32 %v676, %v683
      %v724 = vlaneseq
      %v725 = vshrl.u32 %v724, 7
      %v726 = vsub.s32 1, %v725
      %v727 = vrot.slane %v679, %v726
      %v728 = vadd.f32 %v684, %v727
      %v729 = vadd.f32 %v685, %v727
      %v730 = vadd.f32 %v686, %v727
      %v731 = vadd.f32 %v687, %v727
      %v732 = vadd.f32 %v688, %v727
      %v733 = vadd.f32 %v689, %v727
      %v734 = vadd.f32 %v690, %v727
      %v735 = vadd.f32 %v691, %v727
      %v736 = vadd.f32 %v692, %v727
      %v737 = vadd.f32 %v693, %v727
      %v738 = vadd.f32 %v694, %v727
      %v739 = vadd.f32 %v695, %v727
      %v740 = vadd.f32 %v696, %v727
      %v741 = vadd.f32 %v697, %v727
      %v742 = vadd.f32 %v698, %v727
      %v743 = vadd.f32 %v699, %v727
      %v744 = vadd.f32 %v700, %v727
      %v745 = vadd.f32 %v701, %v727
      %v746 = vadd.f32 %v702, %v727
      %v747 = vadd.f32 %v703, %v727
      %v748 = vadd.f32 %v704, %v727
      %v749 = vadd.f32 %v705, %v727
      %v750 = vadd.f32 %v706, %v727
      %v751 = vadd.f32 %v707, %v727
      %v752 = vadd.f32 %v708, %v727
      %v753 = vadd.f32 %v709, %v727
      %v754 = vadd.f32 %v710, %v727
      %v755 = vadd.f32 %v711, %v727
      %v756 = vadd.f32 %v712, %v727
      %v757 = vadd.f32 %v713, %v727
      %v758 = vadd.f32 %v714, %v727
      %v759 = vadd.f32 %v715, %v727
      %v760 = vadd.f32 %v716, %v727
      %v761 = vadd.f32 %v717, %v727
      %v762 = vadd.f32 %v718, %v727
      %v763 = vadd.f32 %v719, %v727
      %v764 = vadd.f32 %v720, %v727
      %v765 = vadd.f32 %v721, %v727
      %v766 = vadd.f32 %v722, %v727
      %v767 = vadd.f32 %v723, %v727
      %v768 = vmax.f32 %v728, 0.0
      %v769 = vmax.f32 %v729, 0.0
      %v770 = vmax.f32 %v730, 0.0
      %v771 = vmax.f32 %v731, 0.0
      %v772 = vmax.f32 %v732, 0.0
      %v773 = vmax.f32 %v733, 0.0
      %v774 = vmax.f32 %v734, 0.0
      %v775 = vmax.f32 %v735, 0.0
      %v776 = vmax.f32 %v736, 0.0
      %v777 = vmax.f32 %v737, 0.0
      %v778 = vmax.f32 %v738, 0.0
      %v779 = vmax.f32 %v739, 0.0
      %v780 = vmax.f32 %v740, 0.0
      %v781 = vmax.f32 %v741, 0.0
      %v782 = vmax.f32 %v742, 0.0
      %v783 = vmax.f32 %v743, 0.0
      %v784 = vmax.f32 %v744, 0.0
      %v785 = vmax.f32 %v745, 0.0
      %v786 = vmax.f32 %v746, 0.0
      %v787 = vmax.f32 %v747, 0.0
      %v788 = vmax.f32 %v748, 0.0
      %v789 = vmax.f32 %v749, 0.0
      %v790 = vmax.f32 %v750, 0.0
      %v791 = vmax.f32 %v751, 0.0
      %v792 = vmax.f32 %v752, 0.0
      %v793 = vmax.f32 %v753, 0.0
      %v794 = vmax.f32 %v754, 0.0
      %v795 = vmax.f32 %v755, 0.0
      %v796 = vmax.f32 %v756, 0.0
      %v797 = vmax.f32 %v757, 0.0
      %v798 = vmax.f32 %v758, 0.0
      %v799 = vmax.f32 %v759, 0.0
      %v800 = vmax.f32 %v760, 0.0
      %v801 = vmax.f32 %v761, 0.0
      %v802 = vmax.f32 %v762, 0.0
      %v803 = vmax.f32 %v763, 0.0
      %v804 = vmax.f32 %v764, 0.0
      %v805 = vmax.f32 %v765, 0.0
      %v806 = vmax.f32 %v766, 0.0
      %v807 = vmax.f32 %v767, 0.0
      %v808 = vpack.c.bf16 %v769, %v768
      %v809 = vpack.c.bf16 %v771, %v770
      %v810 = vpack.c.bf16 %v773, %v772
      %v811 = vpack.c.bf16 %v775, %v774
      %v812 = vpack.c.bf16 %v777, %v776
      %v813 = vpack.c.bf16 %v779, %v778
      %v814 = vpack.c.bf16 %v781, %v780
      %v815 = vpack.c.bf16 %v783, %v782
      %v816 = vpack.c.bf16 %v785, %v784
      %v817 = vpack.c.bf16 %v787, %v786
      %v818 = vpack.c.bf16 %v789, %v788
      %v819 = vpack.c.bf16 %v791, %v790
      %v820 = vpack.c.bf16 %v793, %v792
      %v821 = vpack.c.bf16 %v795, %v794
      %v822 = vpack.c.bf16 %v797, %v796
      %v823 = vpack.c.bf16 %v799, %v798
      %v824 = vpack.c.bf16 %v801, %v800
      %v825 = vpack.c.bf16 %v803, %v802
      %v826 = vpack.c.bf16 %v805, %v804
      %v827 = vpack.c.bf16 %v807, %v806
      %v848 = vunpack.c.l.b16 %v808
      %v849 = vunpack.c.h.b16 %v808
      %v850 = vunpack.c.l.b16 %v809
      %v851 = vunpack.c.h.b16 %v809
      %v852 = vunpack.c.l.b16 %v810
      %v853 = vunpack.c.h.b16 %v810
      %v854 = vunpack.c.l.b16 %v811
      %v855 = vunpack.c.h.b16 %v811
      %v856 = vunpack.c.l.b16 %v812
      %v857 = vunpack.c.h.b16 %v812
      %v858 = vunpack.c.l.b16 %v813
      %v859 = vunpack.c.h.b16 %v813
      %v860 = vunpack.c.l.b16 %v814
      %v861 = vunpack.c.h.b16 %v814
      %v862 = vunpack.c.l.b16 %v815
      %v863 = vunpack.c.h.b16 %v815
      %v864 = vunpack.c.l.b16 %v816
      %v865 = vunpack.c.h.b16 %v816
      %v866 = vunpack.c.l.b16 %v817
      %v867 = vunpack.c.h.b16 %v817
      %v868 = vunpack.c.l.b16 %v818
      %v869 = vunpack.c.h.b16 %v818
      %v870 = vunpack.c.l.b16 %v819
      %v871 = vunpack.c.h.b16 %v819
      %v872 = vunpack.c.l.b16 %v820
      %v873 = vunpack.c.h.b16 %v820
      %v874 = vunpack.c.l.b16 %v821
      %v875 = vunpack.c.h.b16 %v821
      %v876 = vunpack.c.l.b16 %v822
      %v877 = vunpack.c.h.b16 %v822
      %v878 = vunpack.c.l.b16 %v823
      %v879 = vunpack.c.h.b16 %v823
      %v880 = vunpack.c.l.b16 %v824
      %v881 = vunpack.c.h.b16 %v824
      %v882 = vunpack.c.l.b16 %v825
      %v883 = vunpack.c.h.b16 %v825
      %v884 = vunpack.c.l.b16 %v826
      %v885 = vunpack.c.h.b16 %v826
      %v886 = vunpack.c.l.b16 %v827
      %v887 = vunpack.c.h.b16 %v827
      %v888 = vpack.c.b16 %v848, %v848
      %v889 = vpack.c.b16 %v849, %v849
      %v890 = vpack.c.b16 %v850, %v850
      %v891 = vpack.c.b16 %v851, %v851
      %v892 = vpack.c.b16 %v852, %v852
      %v893 = vpack.c.b16 %v853, %v853
      %v894 = vpack.c.b16 %v854, %v854
      %v895 = vpack.c.b16 %v855, %v855
      %v896 = vpack.c.b16 %v856, %v856
      %v897 = vpack.c.b16 %v857, %v857
      %v898 = vpack.c.b16 %v858, %v858
      %v899 = vpack.c.b16 %v859, %v859
      %v900 = vpack.c.b16 %v860, %v860
      %v901 = vpack.c.b16 %v861, %v861
      %v902 = vpack.c.b16 %v862, %v862
      %v903 = vpack.c.b16 %v863, %v863
      %v904 = vpack.c.b16 %v864, %v864
      %v905 = vpack.c.b16 %v865, %v865
      %v906 = vpack.c.b16 %v866, %v866
      %v907 = vpack.c.b16 %v867, %v867
      %v908 = vpack.c.b16 %v868, %v868
      %v909 = vpack.c.b16 %v869, %v869
      %v910 = vpack.c.b16 %v870, %v870
      %v911 = vpack.c.b16 %v871, %v871
      %v912 = vpack.c.b16 %v872, %v872
      %v913 = vpack.c.b16 %v873, %v873
      %v914 = vpack.c.b16 %v874, %v874
      %v915 = vpack.c.b16 %v875, %v875
      %v916 = vpack.c.b16 %v876, %v876
      %v917 = vpack.c.b16 %v877, %v877
      %v918 = vpack.c.b16 %v878, %v878
      %v919 = vpack.c.b16 %v879, %v879
      %v920 = vpack.c.b16 %v880, %v880
      %v921 = vpack.c.b16 %v881, %v881
      %v922 = vpack.c.b16 %v882, %v882
      %v923 = vpack.c.b16 %v883, %v883
      %v924 = vpack.c.b16 %v884, %v884
      %v925 = vpack.c.b16 %v885, %v885
      %v926 = vpack.c.b16 %v886, %v886
      %v927 = vpack.c.b16 %v887, %v887
      %968 = vst [vmem:[%s260] sm:$0xf] %v888
      %969 = vst [vmem:[%s260 + $0x4] sm:$0xf] %v889
      %970 = vst [vmem:[%s260 + $0x8] sm:$0xf] %v890
      %971 = vst [vmem:[%s260 + $0xc] sm:$0xf] %v891
      %972 = vst [vmem:[%s260 + $0x10] sm:$0xf] %v892
      %973 = vst [vmem:[%s260 + $0x14] sm:$0xf] %v893
      %974 = vst [vmem:[%s260 + $0x18] sm:$0xf] %v894
      %975 = vst [vmem:[%s260 + $0x1c] sm:$0xf] %v895
      %976 = vst [vmem:[%s260 + $0x20] sm:$0xf] %v896
      %977 = vst [vmem:[%s260 + $0x24] sm:$0xf] %v897
      %978 = vst [vmem:[%s260 + $0x28] sm:$0xf] %v898
      %979 = vst [vmem:[%s260 + $0x2c] sm:$0xf] %v899
      %980 = vst [vmem:[%s260 + $0x30] sm:$0xf] %v900
      %981 = vst [vmem:[%s260 + $0x34] sm:$0xf] %v901
      %982 = vst [vmem:[%s260 + $0x38] sm:$0xf] %v902
      %983 = vst [vmem:[%s260 + $0x3c] sm:$0xf] %v903
      %984 = vst [vmem:[%s260 + $0x40] sm:$0xf] %v904
      %985 = vst [vmem:[%s260 + $0x44] sm:$0xf] %v905
      %986 = vst [vmem:[%s260 + $0x48] sm:$0xf] %v906
      %987 = vst [vmem:[%s260 + $0x4c] sm:$0xf] %v907
      %988 = vst [vmem:[%s260 + $0x50] sm:$0xf] %v908
      %989 = vst [vmem:[%s260 + $0x54] sm:$0xf] %v909
      %990 = vst [vmem:[%s260 + $0x58] sm:$0xf] %v910
      %991 = vst [vmem:[%s260 + $0x5c] sm:$0xf] %v911
      %992 = vst [vmem:[%s260 + $0x60] sm:$0xf] %v912
      %993 = vst [vmem:[%s260 + $0x64] sm:$0xf] %v913
      %994 = vst [vmem:[%s260 + $0x68] sm:$0xf] %v914
      %995 = vst [vmem:[%s260 + $0x6c] sm:$0xf] %v915
      %996 = vst [vmem:[%s260 + $0x70] sm:$0xf] %v916
      %997 = vst [vmem:[%s260 + $0x74] sm:$0xf] %v917
      %998 = vst [vmem:[%s260 + $0x78] sm:$0xf] %v918
      %999 = vst [vmem:[%s260 + $0x7c] sm:$0xf] %v919
      %1000 = vst [vmem:[%s260 + $0x80] sm:$0xf] %v920
      %1001 = vst [vmem:[%s260 + $0x84] sm:$0xf] %v921
      %1002 = vst [vmem:[%s260 + $0x88] sm:$0xf] %v922
      %1003 = vst [vmem:[%s260 + $0x8c] sm:$0xf] %v923
      %1004 = vst [vmem:[%s260 + $0x90] sm:$0xf] %v924
      %1005 = vst [vmem:[%s260 + $0x94] sm:$0xf] %v925
      %1006 = vst [vmem:[%s260 + $0x98] sm:$0xf] %v926
      %1007 = vst [vmem:[%s260 + $0x9c] sm:$0xf] %v927
      %s1008 = smul.u32 40, %s19
      %p1009 = scmp.lt.s32.totalorder %s1008, 359
      %s1010 = scalar_select %p1009, %s1008, 359
      %p1011 = scmp.lt.s32.totalorder %s20, 0
      %s1012 = scalar_select %p1011, %s20, 0
      %s1013 = sadd.s32 %s1012, %s1010
      %s1014 = smul.addr %s1013, 4
      %s1015 = scalar_lea.vmem %s3, %s1014
      // Predicated region
      $region33: #{conv2d_pallas.1} parent=31 // pred_check
        %p1016 = pneg %p135
      $region34: #{conv2d_pallas.1} parent=31 // pred_check_branch
        %1018 = sbr.rel (%p1016) target = $region36
      $region35: #{conv2d_pallas.1} parent=31 // pred_region
        %s1019 = smul.u32 40, %s19
      $region36: #{conv2d_pallas.1} parent=31 // pred_fallthru
        _
    $region32: #{conv2d_pallas.1} parent=5 // pred_fallthru
      _
    %p1020 = scmp.le.s32.totalorder 2, %s9
    // Predicated region
    $region37: #{conv2d_pallas.1} parent=5 // pred_check
      %p1021 = pneg %p1020
    $region38: #{conv2d_pallas.1} parent=5 // pred_check_branch
      %1023 = sbr.rel (%p1021) target = $region40
    $region39: #{conv2d_pallas.1} parent=5 // pred_region
      %s1024 = ssub.s32 %s9, 2
      // Predicated region
      $region41: #{conv2d_pallas.1} parent=39 // pred_check
        %p1025 = pneg %p141
      $region42: #{conv2d_pallas.1} parent=39 // pred_check_branch
        %1027 = sbr.rel (%p1025) target = $region44
      $region43: #{conv2d_pallas.1} parent=39 // pred_region
        %s1028 = smul.u32 40, %s22
        %p1029 = scmp.lt.s32.totalorder %s1028, 359
        %s1030 = scalar_select %p1029, %s1028, 359
        %p1031 = scmp.lt.s32.totalorder %s23, 0
        %s1032 = scalar_select %p1031, %s23, 0
        %s1033 = sadd.s32 %s1032, %s1030
        %s1034 = smul.addr %s1033, 4
        %s1035 = scalar_lea.vmem %s3, %s1034
      $region44: #{conv2d_pallas.1} parent=39 // pred_fallthru
        _
    $region40: #{conv2d_pallas.1} parent=5 // pred_fallthru
      _
  $region6: #{conv2d_pallas.1} parent=0 // loop_footer
    %s13 = sadd.s32 1, %s9
  $region7: #{conv2d_pallas.1} parent=0 // loop_footer_branch
    %8 = sbr.rel target = $region3
  $region8: #{conv2d_pallas.1} parent=0 // loop_exit
    _

</llo_original>
